<compile_context>
chip_gen: v6e
topology: v6e:2x2x1
jax: 0.10.0
libtpu: 0.0.40
codegen_flags: <defaults>
</compile_context>

<pallas_src>
import jax
import jax.numpy as jnp
from jax import lax
from jax.experimental import pallas as pl
from jax.experimental.pallas import tpu as pltpu

P_DROP = 0.5
SCALE = 1.0 / (1.0 - P_DROP)   # 2.0

LANE = 128                     # lane-dense last dim -> unmasked vst
SUBLANE = 8                    # sublane granularity for the rows dim
MAX_BLOCK_ROWS = 4096          # 4096 x 128 f32 = 2 MiB per operand block


def _round_up(a: int, b: int) -> int:
    return ((a + b - 1) // b) * b


def _choose_block_rows(rows: int) -> int:
    """Row tile: as large as 2 MiB, but aim for >= 2 grid steps when possible so v7x's two
    TensorCores can split the work; always a multiple of the sublane (8)."""
    if rows <= 2 * SUBLANE:
        return rows
    return min(MAX_BLOCK_ROWS, _round_up((rows + 1) // 2, SUBLANE))


def _mix32(v):
    """32-bit avalanche hash (Mueller/degski).  All constants fit in int32, so they lower as
    plain jaxpr literals (nothing is captured as a constant array)."""
    v = (v ^ (v >> 16)) * 0x45D9F3B
    v = (v ^ (v >> 16)) * 0x45D9F3B
    v = (v ^ (v >> 16)) * 0x45D9F3B
    return v ^ (v >> 16)


def dropout_kernel(seed_ref, x_ref, o_ref):
    block_rows, lane = x_ref.shape
    i = pl.program_id(0)

    # Global element index of every lane in this block (uint32; wraps harmlessly for huge inputs).
    row0 = (i * block_rows).astype(jnp.uint32)
    row_ids = lax.broadcasted_iota(jnp.int32, (block_rows, lane), 0).astype(jnp.uint32)
    lane_ids = lax.broadcasted_iota(jnp.int32, (block_rows, lane), 1).astype(jnp.uint32)
    idx = (row0 + row_ids) * lane + lane_ids

    # In-kernel counter-based RNG: hash (element index, seed) -> uniform 32-bit value.
    # Every element (and hence every block) gets a distinct counter, so no mask repetition.
    seed = seed_ref[0].astype(jnp.uint32)
    bits = _mix32(idx ^ _mix32(seed))

    # keep w.p. 1 - p = 0.5  <=>  top hash bit set: one shift + compare per vreg.
    keep = (bits >> 31) == 1

    x = x_ref[...]
    # Weak-typed Python scalars keep the arithmetic in x's dtype (no f32 round trip for bf16).
    o_ref[...] = jnp.where(keep, x * SCALE, 0.0).astype(o_ref.dtype)


def dropout_pallas(x, seed, p: float = P_DROP):
    """Elementwise dropout with drop-probability p (= 0.5, baked into the kernel) and 1/(1-p)
    rescaling of kept elements, matching F.dropout(x, p=0.5) in training mode."""
    assert p == P_DROP, "drop probability is baked into the kernel as 0.5"
    orig_shape = x.shape
    n = x.size

    # Lane-dense 2D slab: (rows, 128) with rows a multiple of 8.  Only minimal padding; the
    # grid handles a partial trailing block via pl.cdiv (no padding up to a block multiple).
    rows = _round_up(max(1, pl.cdiv(n, LANE)), SUBLANE)
    padded = rows * LANE

    x_flat = x.reshape(-1)
    if padded != n:
        x_flat = jnp.pad(x_flat, (0, padded - n))
    x2d = x_flat.reshape(rows, LANE)

    block_rows = _choose_block_rows(rows)
    grid = (pl.cdiv(rows, block_rows),)

    seed_arr = jnp.asarray(seed, dtype=jnp.int32).reshape((1,))

    out = pl.pallas_call(
        dropout_kernel,
        out_shape=jax.ShapeDtypeStruct((rows, LANE), x.dtype),
        grid_spec=pltpu.PrefetchScalarGridSpec(
            num_scalar_prefetch=1,                      # scalar seed lives in SMEM
            grid=grid,
            in_specs=[pl.BlockSpec((block_rows, LANE), lambda i, seed_ref: (i, 0))],
            out_specs=pl.BlockSpec((block_rows, LANE), lambda i, seed_ref: (i, 0)),
        ),
        compiler_params=pltpu.CompilerParams(
            dimension_semantics=("parallel",),          # lets v7x's two TCs split the grid
        ),
    )(seed_arr, x2d)

    out_flat = out.reshape(-1)
    if padded != n:
        out_flat = out_flat[:n]
    return out_flat.reshape(orig_shape)


if __name__ == "__main__":
    key = jax.random.PRNGKey(0)
    k_x, k_seed, k_big = jax.random.split(key, 3)

    # Matches the reference input: x1 = torch.randn(1, 2, 2)
    x1 = jax.random.normal(k_x, (1, 2, 2), dtype=jnp.float32)
    seed = jax.random.randint(k_seed, (), 0, jnp.iinfo(jnp.int32).max, dtype=jnp.int32)

    y1 = jax.block_until_ready(dropout_pallas(x1, seed))
    assert y1.shape == x1.shape
    ok1 = bool(jnp.all((y1 == 0.0) | jnp.isclose(y1, SCALE * x1, rtol=1e-6, atol=1e-6)))
    assert ok1, "dropout output not in {0, 2*x}"

    # Larger check exercising a multi-step grid with a partial trailing block.
    x_big = jax.random.normal(k_big, (64, 257), dtype=jnp.float32)
    y_big = jax.block_until_ready(dropout_pallas(x_big, seed))
    assert y_big.shape == x_big.shape
    ok2 = bool(jnp.all((y_big == 0.0) | jnp.isclose(y_big, SCALE * x_big, rtol=1e-6, atol=1e-6)))
    assert ok2, "dropout output not in {0, 2*x}"
    keep_frac = float(jnp.mean((y_big != 0.0).astype(jnp.float32)))
    assert 0.40 < keep_frac < 0.60, f"keep fraction {keep_frac} far from 0.5"

    print("KERNEL_OK")
</pallas_src>

<mosaic_0001>
module attributes {stable_mosaic.version = 11 : i64} {
  func.func @dropout_kernel(%arg0: i32, %arg1: memref<1xi32, #tpu.memory_space<smem>>, %arg2: memref<8x128xf32, #tpu.memory_space<vmem>>, %arg3: memref<8x128xf32, #tpu.memory_space<vmem>>) attributes {dimension_semantics = [#tpu.dimension_semantics<parallel>], iteration_bounds = array<i64: 1>, scalar_prefetch = 1 : i64, scratch_operands = 0 : i64, tpu.core_type = #tpu.core_type<tc>, window_params = [{transform_indices = @transform_0, window_bounds = array<i64: 8, 128>}, {transform_indices = @transform_1, window_bounds = array<i64: 8, 128>}]} {
    %c8_i32 = arith.constant 8 : i32
    %0 = arith.muli %arg0, %c8_i32 : i32
    %1 = tpu.iota {dimensions = array<i32: 0>} : vector<8x128xi32>
    %2 = tpu.iota {dimensions = array<i32: 1>} : vector<8x128xi32>
    %3 = vector.broadcast %0 : i32 to vector<8x128xi32>
    %4 = arith.addi %3, %1 : vector<8x128xi32>
    %c128_i32 = arith.constant 128 : i32
    %5 = vector.broadcast %c128_i32 : i32 to vector<8x128xi32>
    %6 = arith.muli %4, %5 : vector<8x128xi32>
    %7 = arith.addi %6, %2 : vector<8x128xi32>
    %c0 = arith.constant 0 : index
    %8 = memref.load %arg1[%c0] : memref<1xi32, #tpu.memory_space<smem>>
    %c16_i32 = arith.constant 16 : i32
    %9 = arith.shrui %8, %c16_i32 : i32
    %10 = arith.xori %8, %9 : i32
    %c73244475_i32 = arith.constant 73244475 : i32
    %11 = arith.muli %10, %c73244475_i32 : i32
    %c16_i32_0 = arith.constant 16 : i32
    %12 = arith.shrui %11, %c16_i32_0 : i32
    %13 = arith.xori %11, %12 : i32
    %c73244475_i32_1 = arith.constant 73244475 : i32
    %14 = arith.muli %13, %c73244475_i32_1 : i32
    %c16_i32_2 = arith.constant 16 : i32
    %15 = arith.shrui %14, %c16_i32_2 : i32
    %16 = arith.xori %14, %15 : i32
    %c73244475_i32_3 = arith.constant 73244475 : i32
    %17 = arith.muli %16, %c73244475_i32_3 : i32
    %c16_i32_4 = arith.constant 16 : i32
    %18 = arith.shrui %17, %c16_i32_4 : i32
    %19 = arith.xori %17, %18 : i32
    %20 = vector.broadcast %19 : i32 to vector<8x128xi32>
    %21 = arith.xori %7, %20 : vector<8x128xi32>
    %c16_i32_5 = arith.constant 16 : i32
    %22 = vector.broadcast %c16_i32_5 : i32 to vector<8x128xi32>
    %23 = arith.shrui %21, %22 : vector<8x128xi32>
    %24 = arith.xori %21, %23 : vector<8x128xi32>
    %c73244475_i32_6 = arith.constant 73244475 : i32
    %25 = vector.broadcast %c73244475_i32_6 : i32 to vector<8x128xi32>
    %26 = arith.muli %24, %25 : vector<8x128xi32>
    %c16_i32_7 = arith.constant 16 : i32
    %27 = vector.broadcast %c16_i32_7 : i32 to vector<8x128xi32>
    %28 = arith.shrui %26, %27 : vector<8x128xi32>
    %29 = arith.xori %26, %28 : vector<8x128xi32>
    %c73244475_i32_8 = arith.constant 73244475 : i32
    %30 = vector.broadcast %c73244475_i32_8 : i32 to vector<8x128xi32>
    %31 = arith.muli %29, %30 : vector<8x128xi32>
    %c16_i32_9 = arith.constant 16 : i32
    %32 = vector.broadcast %c16_i32_9 : i32 to vector<8x128xi32>
    %33 = arith.shrui %31, %32 : vector<8x128xi32>
    %34 = arith.xori %31, %33 : vector<8x128xi32>
    %c73244475_i32_10 = arith.constant 73244475 : i32
    %35 = vector.broadcast %c73244475_i32_10 : i32 to vector<8x128xi32>
    %36 = arith.muli %34, %35 : vector<8x128xi32>
    %c16_i32_11 = arith.constant 16 : i32
    %37 = vector.broadcast %c16_i32_11 : i32 to vector<8x128xi32>
    %38 = arith.shrui %36, %37 : vector<8x128xi32>
    %39 = arith.xori %36, %38 : vector<8x128xi32>
    %c31_i32 = arith.constant 31 : i32
    %40 = vector.broadcast %c31_i32 : i32 to vector<8x128xi32>
    %41 = arith.shrui %39, %40 : vector<8x128xi32>
    %c1_i32 = arith.constant 1 : i32
    %42 = vector.broadcast %c1_i32 : i32 to vector<8x128xi32>
    %43 = arith.cmpi eq, %41, %42 : vector<8x128xi32>
    %c0_12 = arith.constant 0 : index
    %c0_13 = arith.constant 0 : index
    %44 = vector.load %arg2[%c0_12, %c0_13] : memref<8x128xf32, #tpu.memory_space<vmem>>, vector<8x128xf32>
    %cst = arith.constant 2.000000e+00 : f32
    %45 = vector.broadcast %cst : f32 to vector<8x128xf32>
    %46 = arith.mulf %44, %45 : vector<8x128xf32>
    %cst_14 = arith.constant 0.000000e+00 : f32
    %47 = vector.broadcast %cst_14 : f32 to vector<8x128xf32>
    %48 = arith.select %43, %46, %47 : vector<8x128xi1>, vector<8x128xf32>
    %c0_15 = arith.constant 0 : index
    %c0_16 = arith.constant 0 : index
    %49 = vector.load %arg3[%c0_15, %c0_16] : memref<8x128xf32, #tpu.memory_space<vmem>>, vector<8x128xf32>
    tpu.vector_store %arg3[%c0_15, %c0_16], %48 {strides = array<i32>} : memref<8x128xf32, #tpu.memory_space<vmem>>, vector<8x128xf32>,
    return
  }
  func.func @transform_0(%arg0: i32, %arg1: memref<1xi32, #tpu.memory_space<smem>>) -> (i32, i32) {
    %c0_i32 = arith.constant 0 : i32
    %c0_i32_0 = arith.constant 0 : i32
    return %arg0, %c0_i32 : i32, i32
  }
  func.func @transform_1(%arg0: i32, %arg1: memref<1xi32, #tpu.memory_space<smem>>) -> (i32, i32) {
    %c0_i32 = arith.constant 0 : i32
    %c0_i32_0 = arith.constant 0 : i32
    return %arg0, %c0_i32 : i32, i32
  }
}

</mosaic_0001>

<llo_original>
// kernel: tpu_custom_call.1
$region0: #{tpu_custom_call.1}
  #allocation0 [shape = 'u32[]', space=smem, size = 0x4, offset = 0x4, fixed_abs, tag = 'smem constant byte address 0x4 - core index']
  #allocation1 [shape = 'u32[144,128]{1,0:T(1,128)}', space=vmem, size = 0x12000, scoped, tag = 'internal scratch']
  #allocation2 [shape = 's32[1]{0}', space=sflag, size = 0x4, scoped, tag = 'scoped memory for tpu_custom_call.1']
  #allocation3 [shape = 's32[1]{0:T(128)S(6)}', space=smem, size = 0x200, scoped, tag = 'prefetched SMEM operand 0']
  %s0 = inlined_call_operand.<no memory space> [shape: s32[1], index: 0, kind: input, shape index: {}]
  %s1 = inlined_call_operand.hbm [shape: f32[8,128], index: 1, kind: input, shape index: {}]
  %s2 = inlined_call_operand.hbm [shape: f32[8,128], index: 2, kind: output, shape index: {}]
  %s3 = sld [smem:[#allocation0]]
  $region18: #{tpu_custom_call.1} parent=0
    _
  %s5 = ssub.s32 1, %s3
  %s6 = scalar_select 0, %s5, %s3
  %7 = sst [smem:[#allocation3]] %s0
  $region1: #{tpu_custom_call.1} parent=0
    #allocation4 [shape = 'u8[4096]{0}', space=vmem, size = 0x1000, scoped, tag = 'input window, operand 1, single buffered']
    #allocation5 [shape = 's32[1]{0}', space=sflag, size = 0x4, scoped, tag = 'scoped memory for tpu_custom_call.1']
    #allocation6 [shape = 's32[1]{0}', space=sflag, size = 0x4, scoped, tag = 'scoped memory for tpu_custom_call.1']
    #allocation7 [shape = 'u8[4096]{0}', space=vmem, size = 0x1000, scoped, tag = 'output window, operand 0, single buffered']
    %8 = vsyncpa [#allocation5], 0
    %9 = vsyncpa [#allocation6], 0
    // Predicated region
    $region2: #{tpu_custom_call.1} parent=1 // pred_check
      _
    $region3: #{tpu_custom_call.1} parent=1 // pred_check_branch
      %11 = sbr.rel (0) target = $region5
    $region4: #{tpu_custom_call.1} parent=1 // pred_region
      %s13 = ssub.s32 128, 128
      %14 = vsyncadd [#allocation5], %s13
      %s16 = sshll.u32 [#allocation4], 4
      %s17 = int_to_ptr.vmem [resolvable:$true] %s16
      %19 = dma.hbm_to_vmem [thread:$0]  %s1, 128, %s17, [#allocation5]
    $region5: #{tpu_custom_call.1} parent=1 // pred_fallthru
      _
    // Predicated region
    $region6: #{tpu_custom_call.1} parent=1 // pred_check
      _
    $region7: #{tpu_custom_call.1} parent=1 // pred_check_branch
      %21 = sbr.rel (0) target = $region9
    $region8: #{tpu_custom_call.1} parent=1 // pred_region
      %22 = dma.done [#allocation5], 128
    $region9: #{tpu_custom_call.1} parent=1 // pred_fallthru
      _
    %s23 = smul.u32 0, 8
    %v24 = vlaneseq
    %v25 = vshrl.u32 %v24, 7
    %v26 = vlaneseq
    %v27 = vand.u32 %v26, 127
    %v28 = vstv %s23
    %v29 = vadd.s32 %v28, %v25
    %v30 = vmul.u32 %v29, 128
    %v31 = vadd.s32 %v30, %v27
    %s32 = sld [smem:[#allocation3]]
    %s33 = sshrl.u32 %s32, 16
    %s34 = sxor.u32 %s32, %s33
    %s35 = smul.u32 %s34, 73244475
    %s36 = sshrl.u32 %s35, 16
    %s37 = sxor.u32 %s35, %s36
    %s38 = smul.u32 %s37, 73244475
    %s39 = sshrl.u32 %s38, 16
    %s40 = sxor.u32 %s38, %s39
    %s41 = smul.u32 %s40, 73244475
    %s42 = sshrl.u32 %s41, 16
    %s43 = sxor.u32 %s41, %s42
    %v44 = vstv %s43
    %v45 = vxor.u32 %v31, %v44
    %v46 = vshrl.u32 %v45, 16
    %v47 = vxor.u32 %v45, %v46
    %v48 = vmul.u32 %v47, 73244475
    %v49 = vshrl.u32 %v48, 16
    %v50 = vxor.u32 %v48, %v49
    %v51 = vmul.u32 %v50, 73244475
    %v52 = vshrl.u32 %v51, 16
    %v53 = vxor.u32 %v51, %v52
    %v54 = vmul.u32 %v53, 73244475
    %v55 = vshrl.u32 %v54, 16
    %v56 = vxor.u32 %v54, %v55
    %v57 = vshrl.u32 %v56, 31
    %vm58 = vcmp.eq.s32.totalorder %v57, 1
    %v59 = vld [vmem:[#allocation4] sm:$0xff]
    %v60 = vmul.f32 %v59, 2.0
    %v61 = vsel %vm58, %v60, 0.0
    %62 = vst [vmem:[#allocation7] sm:$0xff] %v61
    // Predicated region
    $region10: #{tpu_custom_call.1} parent=1 // pred_check
      _
    $region11: #{tpu_custom_call.1} parent=1 // pred_check_branch
      %64 = sbr.rel (0) target = $region13
    $region12: #{tpu_custom_call.1} parent=1 // pred_region
      %s66 = ssub.s32 128, 128
      %67 = vsyncadd [#allocation6], %s66
      %s69 = sshll.u32 [#allocation7], 4
      %s70 = int_to_ptr.vmem [resolvable:$true] %s69
      %72 = dma.vmem_to_hbm [thread:$0]  %s70, 128, %s2, [#allocation6]
    $region13: #{tpu_custom_call.1} parent=1 // pred_fallthru
      _
    // Predicated region
    $region14: #{tpu_custom_call.1} parent=1 // pred_check
      _
    $region15: #{tpu_custom_call.1} parent=1 // pred_check_branch
      %74 = sbr.rel (0) target = $region17
    $region16: #{tpu_custom_call.1} parent=1 // pred_region
      %75 = dma.done [#allocation6], 128
    $region17: #{tpu_custom_call.1} parent=1 // pred_fallthru
      _
    %76 = vsyncpa [#allocation5], 1
    %77 = vsyncpa [#allocation6], 1

</llo_original>
